<compile_context>
chip_gen: v7x
topology: tpu7x:2x2x1
jax: 0.10.0
libtpu: 0.0.40
codegen_flags: <defaults>
</compile_context>

<pallas_src>
import functools

import jax
import jax.numpy as jnp
from jax.experimental import pallas as pl
from jax.experimental.pallas import tpu as pltpu

P_PAD = 128  # lane-dense padded width for the tiny n_depth_params output


# ----------------------------------------------------------------------------
# Single fused kernel: conv-matmul + ReLU -> face pooling/centroid -> MLP
# One grid step == one batch element; all operands live in VMEM.
# ----------------------------------------------------------------------------
def fused_tridepth_kernel(patches_ref, wconv_ref, bconv_ref, facemat_ref,
                          w1p_ref, w1c_ref, b1_ref, w2_ref, b2_ref, o_ref):
    # patches_ref : (HW, 9*Cin) bf16   im2col'd 3x3 'same' patches
    # wconv_ref   : (9*Cin, C)  bf16   conv weights flattened to a single K matmul
    # bconv_ref   : (1, C)      f32
    # facemat_ref : (2F, HW)    bf16   [face-pool weights ; one-hot centroids]
    # w1p/w1c     : (C, HID)    bf16   fc1 split (pool half / centroid half)
    # b1          : (1, HID)    f32
    # w2          : (HID, 128)  bf16   fc2 zero-padded to 128 lanes
    # b2          : (1, 128)    f32
    # o_ref       : (F, 128)    f32

    # 1) backbone conv as ONE MXU matmul, bias + ReLU in f32.
    feats = jnp.dot(patches_ref[...], wconv_ref[...],
                    preferred_element_type=jnp.float32)              # (HW, C)
    feats = jnp.maximum(feats + bconv_ref[...], 0.0)

    # 2) face_pooling + face_centroid features in one stacked matmul.
    ext = jnp.dot(facemat_ref[...], feats.astype(jnp.bfloat16),
                  preferred_element_type=jnp.float32)                # (2F, C)
    num_faces = o_ref.shape[0]
    pool_feats = ext[:num_faces, :]                                  # (F, C)
    cent_feats = ext[num_faces:, :]                                  # (F, C)

    # 3) FaceDepthPredictor layer 1 without materializing concat([pool, cent]):
    #    concat(p, c) @ W1  ==  p @ W1_pool + c @ W1_cent
    h = jnp.dot(pool_feats.astype(jnp.bfloat16), w1p_ref[...],
                preferred_element_type=jnp.float32)
    h = h + jnp.dot(cent_feats.astype(jnp.bfloat16), w1c_ref[...],
                    preferred_element_type=jnp.float32)
    h = jnp.maximum(h + b1_ref[...], 0.0)

    # 4) layer 2, lane-dense (128-wide) output -> unmasked stores.
    o_ref[...] = jnp.dot(h.astype(jnp.bfloat16), w2_ref[...],
                         preferred_element_type=jnp.float32) + b2_ref[...]


# ----------------------------------------------------------------------------
# Thin XLA-side prep (tiny tensors; fused by XLA into one small op before the kernel)
# ----------------------------------------------------------------------------
def _im2col_3x3_same(x_nhwc):
    """(B, H, W, Cin) -> (B, H*W, 9*Cin) with zero 'same' padding.

    At these toy shapes this is ~36 KiB/batch of HBM traffic; at real DRN
    resolutions this extraction should move inside the kernel (halo-tiled).
    """
    B, H, W, Cin = x_nhwc.shape
    xpad = jnp.pad(x_nhwc, ((0, 0), (1, 1), (1, 1), (0, 0)))
    cols = [xpad[:, dy:dy + H, dx:dx + W, :] for dy in range(3) for dx in range(3)]
    return jnp.concatenate(cols, axis=-1).reshape(B, H * W, 9 * Cin)


def prepare_kernel_params(params):
    """One-time (outside jit) repack of the module's weights into kernel layout."""
    conv_w = params["conv_w"]                         # (3, 3, Cin, C)
    C = conv_w.shape[-1]
    fc1_w = params["fc1_w"]                           # (2C, HID), rows: [pool ; cent]
    fc2_w = params["fc2_w"]                           # (HID, P)
    P = fc2_w.shape[-1]
    assert P <= P_PAD
    return {
        "conv_w_mat": conv_w.reshape(-1, C).astype(jnp.bfloat16),        # (9*Cin, C)
        "conv_b": params["conv_b"].reshape(1, C).astype(jnp.float32),
        "fc1_w_pool": fc1_w[:C].astype(jnp.bfloat16),                    # (C, HID)
        "fc1_w_cent": fc1_w[C:].astype(jnp.bfloat16),                    # (C, HID)
        "fc1_b": params["fc1_b"].reshape(1, -1).astype(jnp.float32),
        "fc2_w_pad": jnp.zeros((fc2_w.shape[0], P_PAD), jnp.bfloat16)
                        .at[:, :P].set(fc2_w.astype(jnp.bfloat16)),
        "fc2_b_pad": jnp.zeros((1, P_PAD), jnp.float32)
                        .at[:, :P].set(params["fc2_b"].reshape(1, -1)),
    }


@functools.partial(jax.jit, static_argnames=("n_depth_params",))
def model_forward(scenes_nchw, kparams, face_mat, n_depth_params):
    # PyTorch NCHW -> NHWC (tiny one-time layout op at these shapes).
    x = jnp.transpose(scenes_nchw, (0, 2, 3, 1)).astype(jnp.float32)
    B, H, W, Cin = x.shape
    HW = H * W
    patches = _im2col_3x3_same(x).astype(jnp.bfloat16)                 # (B, HW, 9*Cin)

    two_f, _ = face_mat.shape
    num_faces = two_f // 2
    C = kparams["conv_w_mat"].shape[-1]
    HID = kparams["fc1_w_pool"].shape[-1]

    out_padded = pl.pallas_call(
        fused_tridepth_kernel,
        out_shape=jax.ShapeDtypeStruct((B, num_faces, P_PAD), jnp.float32),
        grid_spec=pltpu.PrefetchScalarGridSpec(
            num_scalar_prefetch=0,
            grid=(B,),
            in_specs=[
                pl.BlockSpec((None, HW, 9 * Cin), lambda b: (b, 0, 0)),
                pl.BlockSpec((9 * Cin, C), lambda b: (0, 0)),
                pl.BlockSpec((1, C), lambda b: (0, 0)),
                pl.BlockSpec((two_f, HW), lambda b: (0, 0)),
                pl.BlockSpec((C, HID), lambda b: (0, 0)),
                pl.BlockSpec((C, HID), lambda b: (0, 0)),
                pl.BlockSpec((1, HID), lambda b: (0, 0)),
                pl.BlockSpec((HID, P_PAD), lambda b: (0, 0)),
                pl.BlockSpec((1, P_PAD), lambda b: (0, 0)),
            ],
            out_specs=pl.BlockSpec((None, num_faces, P_PAD), lambda b: (b, 0, 0)),
        ),
        compiler_params=pltpu.CompilerParams(
            dimension_semantics=("parallel",)),   # B=2 parallel steps -> both v7x TCs
    )(patches, kparams["conv_w_mat"], kparams["conv_b"], face_mat,
      kparams["fc1_w_pool"], kparams["fc1_w_cent"], kparams["fc1_b"],
      kparams["fc2_w_pad"], kparams["fc2_b_pad"])

    # assign_facedepths: returned per-face params ARE the assignment.
    return out_padded[..., :n_depth_params]


def make_synthetic_face_maps(H, W, faces_per_side):
    """Deterministic stand-in for TriDepth's mesh rasterization.

    Returns a single stacked (2F, HW) bf16 matrix: first F rows average each
    face's member pixels (exact 1/4 weights, bf16-exact), last F rows are
    one-hot centroid selectors. Stacking lets one matmul produce both feature
    sets inside the fused kernel.
    """
    F = faces_per_side * faces_per_side
    HW = H * W
    ph, pw = H // faces_per_side, W // faces_per_side
    hh, ww = jnp.meshgrid(jnp.arange(H), jnp.arange(W), indexing="ij")
    fid_flat = ((hh // ph) * faces_per_side + (ww // pw)).reshape(HW)
    member = (fid_flat[None, :] == jnp.arange(F)[:, None]).astype(jnp.float32)
    counts = jnp.maximum(jnp.sum(member, axis=1, keepdims=True), 1.0)  # guard empty faces
    pool_mat = member / counts
    fy = jnp.arange(F) // faces_per_side
    fx = jnp.arange(F) % faces_per_side
    cent_idx = (fy * ph + ph // 2) * W + (fx * pw + pw // 2)
    cent_mat = (jnp.arange(HW)[None, :] == cent_idx[:, None]).astype(jnp.float32)
    return jnp.concatenate([pool_mat, cent_mat], axis=0).astype(jnp.bfloat16)


if __name__ == "__main__":
    # Small shapes consistent with the module's forward.
    B, C_in, H, W = 2, 4, 16, 16
    feat_size = 32          # stands in for feat_size=512
    faces_per_side = 8      # -> 64 mesh faces
    hidden = 64
    n_depth_params = 3      # per-face plane depth parameters

    key = jax.random.PRNGKey(0)
    k_x, k_cw, k_cb, k_w1, k_b1, k_w2, k_b2 = jax.random.split(key, 7)

    scenes = jax.random.normal(k_x, (B, C_in, H, W), dtype=jnp.float32)  # NCHW like PyTorch

    params = {
        "conv_w": 0.1 * jax.random.normal(k_cw, (3, 3, C_in, feat_size), jnp.float32),
        "conv_b": 0.1 * jax.random.normal(k_cb, (feat_size,), jnp.float32),
        "fc1_w": 0.1 * jax.random.normal(k_w1, (2 * feat_size, hidden), jnp.float32),
        "fc1_b": 0.1 * jax.random.normal(k_b1, (hidden,), jnp.float32),
        "fc2_w": 0.1 * jax.random.normal(k_w2, (hidden, n_depth_params), jnp.float32),
        "fc2_b": 0.1 * jax.random.normal(k_b2, (n_depth_params,), jnp.float32),
    }

    kparams = prepare_kernel_params(params)
    face_mat = make_synthetic_face_maps(H, W, faces_per_side)

    out = model_forward(scenes, kparams, face_mat, n_depth_params)
    out = jax.block_until_ready(out)
    assert out.shape == (B, faces_per_side * faces_per_side, n_depth_params)
    assert bool(jnp.all(jnp.isfinite(out)))
    print("KERNEL_OK")
</pallas_src>

<mosaic_0001>
module attributes {stable_mosaic.version = 11 : i64} {
  func.func @fused_tridepth_kernel(%arg0: i32, %arg1: memref<1x256x36xbf16, #tpu.memory_space<vmem>>, %arg2: memref<36x32xbf16, #tpu.memory_space<vmem>>, %arg3: memref<1x32xf32, #tpu.memory_space<vmem>>, %arg4: memref<128x256xbf16, #tpu.memory_space<vmem>>, %arg5: memref<32x64xbf16, #tpu.memory_space<vmem>>, %arg6: memref<32x64xbf16, #tpu.memory_space<vmem>>, %arg7: memref<1x64xf32, #tpu.memory_space<vmem>>, %arg8: memref<64x128xbf16, #tpu.memory_space<vmem>>, %arg9: memref<1x128xf32, #tpu.memory_space<vmem>>, %arg10: memref<1x64x128xf32, #tpu.memory_space<vmem>>) attributes {dimension_semantics = [#tpu.dimension_semantics<parallel>], iteration_bounds = array<i64: 2>, scalar_prefetch = 0 : i64, scratch_operands = 0 : i64, tpu.core_type = #tpu.core_type<tc>, window_params = [{transform_indices = @transform_0, window_bounds = array<i64: 1, 256, 36>}, {pipeline_mode = #tpu.pipeline_mode<synchronous>, transform_indices = @transform_1, window_bounds = array<i64: 36, 32>}, {pipeline_mode = #tpu.pipeline_mode<synchronous>, transform_indices = @transform_2, window_bounds = array<i64: 1, 32>}, {pipeline_mode = #tpu.pipeline_mode<synchronous>, transform_indices = @transform_3, window_bounds = array<i64: 128, 256>}, {pipeline_mode = #tpu.pipeline_mode<synchronous>, transform_indices = @transform_4, window_bounds = array<i64: 32, 64>}, {pipeline_mode = #tpu.pipeline_mode<synchronous>, transform_indices = @transform_5, window_bounds = array<i64: 32, 64>}, {pipeline_mode = #tpu.pipeline_mode<synchronous>, transform_indices = @transform_6, window_bounds = array<i64: 1, 64>}, {pipeline_mode = #tpu.pipeline_mode<synchronous>, transform_indices = @transform_7, window_bounds = array<i64: 64, 128>}, {pipeline_mode = #tpu.pipeline_mode<synchronous>, transform_indices = @transform_8, window_bounds = array<i64: 1, 128>}, {transform_indices = @transform_9, window_bounds = array<i64: 1, 64, 128>}]} {
    %c0 = arith.constant 0 : index
    %c0_0 = arith.constant 0 : index
    %c0_1 = arith.constant 0 : index
    %0 = vector.load %arg1[%c0, %c0_0, %c0_1] : memref<1x256x36xbf16, #tpu.memory_space<vmem>>, vector<1x256x36xbf16>
    %1 = vector.shape_cast %0 : vector<1x256x36xbf16> to vector<256x36xbf16>
    %c0_2 = arith.constant 0 : index
    %c0_3 = arith.constant 0 : index
    %2 = vector.load %arg2[%c0_2, %c0_3] : memref<36x32xbf16, #tpu.memory_space<vmem>>, vector<36x32xbf16>
    %cst = arith.constant dense<0.000000e+00> : vector<256x32xf32>
    %3 = tpu.matmul %1, %2, %cst {dimension_numbers = #tpu.dot_dimension_numbers<[1], [0], [0], [1], [0, 0, 1, 1], [], []>} : vector<256x36xbf16>, vector<36x32xbf16>, vector<256x32xf32> -> vector<256x32xf32>
    %c0_4 = arith.constant 0 : index
    %c0_5 = arith.constant 0 : index
    %4 = vector.load %arg3[%c0_4, %c0_5] : memref<1x32xf32, #tpu.memory_space<vmem>>, vector<1x32xf32>
    %5 = vector.broadcast %4 : vector<1x32xf32> to vector<256x32xf32>
    %6 = arith.addf %3, %5 : vector<256x32xf32>
    %cst_6 = arith.constant 0.000000e+00 : f32
    %7 = vector.broadcast %cst_6 : f32 to vector<256x32xf32>
    %8 = arith.maximumf %6, %7 : vector<256x32xf32>
    %c0_7 = arith.constant 0 : index
    %c0_8 = arith.constant 0 : index
    %9 = vector.load %arg4[%c0_7, %c0_8] : memref<128x256xbf16, #tpu.memory_space<vmem>>, vector<128x256xbf16>
    %10 = arith.truncf %8 : vector<256x32xf32> to vector<256x32xbf16>
    %cst_9 = arith.constant dense<0.000000e+00> : vector<128x32xf32>
    %11 = tpu.matmul %9, %10, %cst_9 {dimension_numbers = #tpu.dot_dimension_numbers<[1], [0], [0], [1], [0, 0, 1, 1], [], []>} : vector<128x256xbf16>, vector<256x32xbf16>, vector<128x32xf32> -> vector<128x32xf32>
    %12 = vector.extract_strided_slice %11 {offsets = [0, 0], sizes = [64, 32], strides = [1, 1]} : vector<128x32xf32> to vector<64x32xf32>
    %13 = vector.extract_strided_slice %11 {offsets = [64, 0], sizes = [64, 32], strides = [1, 1]} : vector<128x32xf32> to vector<64x32xf32>
    %14 = arith.truncf %12 : vector<64x32xf32> to vector<64x32xbf16>
    %c0_10 = arith.constant 0 : index
    %c0_11 = arith.constant 0 : index
    %15 = vector.load %arg5[%c0_10, %c0_11] : memref<32x64xbf16, #tpu.memory_space<vmem>>, vector<32x64xbf16>
    %cst_12 = arith.constant dense<0.000000e+00> : vector<64x64xf32>
    %16 = tpu.matmul %14, %15, %cst_12 {dimension_numbers = #tpu.dot_dimension_numbers<[1], [0], [0], [1], [0, 0, 1, 1], [], []>} : vector<64x32xbf16>, vector<32x64xbf16>, vector<64x64xf32> -> vector<64x64xf32>
    %17 = arith.truncf %13 : vector<64x32xf32> to vector<64x32xbf16>
    %c0_13 = arith.constant 0 : index
    %c0_14 = arith.constant 0 : index
    %18 = vector.load %arg6[%c0_13, %c0_14] : memref<32x64xbf16, #tpu.memory_space<vmem>>, vector<32x64xbf16>
    %cst_15 = arith.constant dense<0.000000e+00> : vector<64x64xf32>
    %19 = tpu.matmul %17, %18, %cst_15 {dimension_numbers = #tpu.dot_dimension_numbers<[1], [0], [0], [1], [0, 0, 1, 1], [], []>} : vector<64x32xbf16>, vector<32x64xbf16>, vector<64x64xf32> -> vector<64x64xf32>
    %20 = arith.addf %16, %19 : vector<64x64xf32>
    %c0_16 = arith.constant 0 : index
    %c0_17 = arith.constant 0 : index
    %21 = vector.load %arg7[%c0_16, %c0_17] : memref<1x64xf32, #tpu.memory_space<vmem>>, vector<1x64xf32>
    %22 = vector.broadcast %21 : vector<1x64xf32> to vector<64x64xf32>
    %23 = arith.addf %20, %22 : vector<64x64xf32>
    %cst_18 = arith.constant 0.000000e+00 : f32
    %24 = vector.broadcast %cst_18 : f32 to vector<64x64xf32>
    %25 = arith.maximumf %23, %24 : vector<64x64xf32>
    %26 = arith.truncf %25 : vector<64x64xf32> to vector<64x64xbf16>
    %c0_19 = arith.constant 0 : index
    %c0_20 = arith.constant 0 : index
    %27 = vector.load %arg8[%c0_19, %c0_20] : memref<64x128xbf16, #tpu.memory_space<vmem>>, vector<64x128xbf16>
    %cst_21 = arith.constant dense<0.000000e+00> : vector<64x128xf32>
    %28 = tpu.matmul %26, %27, %cst_21 {dimension_numbers = #tpu.dot_dimension_numbers<[1], [0], [0], [1], [0, 0, 1, 1], [], []>} : vector<64x64xbf16>, vector<64x128xbf16>, vector<64x128xf32> -> vector<64x128xf32>
    %c0_22 = arith.constant 0 : index
    %c0_23 = arith.constant 0 : index
    %29 = vector.load %arg9[%c0_22, %c0_23] : memref<1x128xf32, #tpu.memory_space<vmem>>, vector<1x128xf32>
    %30 = vector.broadcast %29 : vector<1x128xf32> to vector<64x128xf32>
    %31 = arith.addf %28, %30 : vector<64x128xf32>
    %c0_24 = arith.constant 0 : index
    %c0_25 = arith.constant 0 : index
    %c0_26 = arith.constant 0 : index
    %32 = vector.load %arg10[%c0_24, %c0_25, %c0_26] : memref<1x64x128xf32, #tpu.memory_space<vmem>>, vector<1x64x128xf32>
    %33 = vector.shape_cast %32 : vector<1x64x128xf32> to vector<64x128xf32>
    %34 = vector.shape_cast %31 : vector<64x128xf32> to vector<1x64x128xf32>
    tpu.vector_store %arg10[%c0_24, %c0_25, %c0_26], %34 {strides = array<i32>} : memref<1x64x128xf32, #tpu.memory_space<vmem>>, vector<1x64x128xf32>,
    return
  }
  func.func @transform_0(%arg0: i32) -> (i32, i32, i32) {
    %c0_i32 = arith.constant 0 : i32
    %c0_i32_0 = arith.constant 0 : i32
    %c0_i32_1 = arith.constant 0 : i32
    return %arg0, %c0_i32, %c0_i32_0 : i32, i32, i32
  }
  func.func @transform_1(%arg0: i32) -> (i32, i32) {
    %c0_i32 = arith.constant 0 : i32
    %c0_i32_0 = arith.constant 0 : i32
    %c0_i32_1 = arith.constant 0 : i32
    return %c0_i32, %c0_i32_0 : i32, i32
  }
  func.func @transform_2(%arg0: i32) -> (i32, i32) {
    %c0_i32 = arith.constant 0 : i32
    %c0_i32_0 = arith.constant 0 : i32
    %c0_i32_1 = arith.constant 0 : i32
    return %c0_i32, %c0_i32_0 : i32, i32
  }
  func.func @transform_3(%arg0: i32) -> (i32, i32) {
    %c0_i32 = arith.constant 0 : i32
    %c0_i32_0 = arith.constant 0 : i32
    %c0_i32_1 = arith.constant 0 : i32
    return %c0_i32, %c0_i32_0 : i32, i32
  }
  func.func @transform_4(%arg0: i32) -> (i32, i32) {
    %c0_i32 = arith.constant 0 : i32
    %c0_i32_0 = arith.constant 0 : i32
    %c0_i32_1 = arith.constant 0 : i32
    return %c0_i32, %c0_i32_0 : i32, i32
  }
  func.func @transform_5(%arg0: i32) -> (i32, i32) {
    %c0_i32 = arith.constant 0 : i32
    %c0_i32_0 = arith.constant 0 : i32
    %c0_i32_1 = arith.constant 0 : i32
    return %c0_i32, %c0_i32_0 : i32, i32
  }
  func.func @transform_6(%arg0: i32) -> (i32, i32) {
    %c0_i32 = arith.constant 0 : i32
    %c0_i32_0 = arith.constant 0 : i32
    %c0_i32_1 = arith.constant 0 : i32
    return %c0_i32, %c0_i32_0 : i32, i32
  }
  func.func @transform_7(%arg0: i32) -> (i32, i32) {
    %c0_i32 = arith.constant 0 : i32
    %c0_i32_0 = arith.constant 0 : i32
    %c0_i32_1 = arith.constant 0 : i32
    return %c0_i32, %c0_i32_0 : i32, i32
  }
  func.func @transform_8(%arg0: i32) -> (i32, i32) {
    %c0_i32 = arith.constant 0 : i32
    %c0_i32_0 = arith.constant 0 : i32
    %c0_i32_1 = arith.constant 0 : i32
    return %c0_i32, %c0_i32_0 : i32, i32
  }
  func.func @transform_9(%arg0: i32) -> (i32, i32, i32) {
    %c0_i32 = arith.constant 0 : i32
    %c0_i32_0 = arith.constant 0 : i32
    %c0_i32_1 = arith.constant 0 : i32
    return %arg0, %c0_i32, %c0_i32_0 : i32, i32, i32
  }
}

</mosaic_0001>

<llo_original>
// kernel: model_forward.1
$region0: #{model_forward.1}
  #allocation0 [shape = 'u32[]', space=smem, size = 0x4, offset = 0x4, fixed_abs, tag = 'smem constant byte address 0x4 - core index']
  #allocation1 [shape = 'u32[144,128]{1,0:T(1,128)}', space=vmem, size = 0x12000, scoped, tag = 'internal scratch']
  %s0 = inlined_call_operand.vmem [shape: bf16[2,256,36], index: 0, kind: input, shape index: {}]
  %s1 = inlined_call_operand.vmem [shape: bf16[36,32], index: 1, kind: input, shape index: {}]
  %s2 = inlined_call_operand.vmem [shape: f32[1,32], index: 2, kind: input, shape index: {}]
  %s3 = inlined_call_operand.vmem [shape: bf16[128,256], index: 3, kind: input, shape index: {}]
  %s4 = inlined_call_operand.vmem [shape: bf16[32,64], index: 4, kind: input, shape index: {}]
  %s5 = inlined_call_operand.vmem [shape: bf16[32,64], index: 5, kind: input, shape index: {}]
  %s6 = inlined_call_operand.vmem [shape: f32[1,64], index: 6, kind: input, shape index: {}]
  %s7 = inlined_call_operand.vmem [shape: bf16[64,128], index: 7, kind: input, shape index: {}]
  %s8 = inlined_call_operand.vmem [shape: f32[1,128], index: 8, kind: input, shape index: {}]
  %s9 = inlined_call_operand.vmem [shape: f32[2,64,128], index: 9, kind: output, shape index: {}]
  %s10 = sld [smem:[#allocation0]]
  $region69: #{model_forward.1} parent=0
    _
  %s12 = ssub.s32 1, %s10
  %s13 = scalar_select 0, %s12, %s10
  loop: start=0, step=1, limit=4
  $region2: #{model_forward.1} parent=0 // loop_pre_header
    _
  $region3: #{model_forward.1} parent=0 // loop_header
    %s15 = sphi 0, %s19
    %p16 = scmp.ge.s32.totalorder %s15, 4
    %s25 = sphi 0, %s27
    %s28 = sphi 0, %s25
    %s29 = sphi 0, %s28
    %s45 = sphi 0, %s29
    %s49 = sphi 0, %s49
    %s51 = sphi 0, %s49
    %s52 = sphi 0, %s51
    %s66 = sphi 0, %s52
    %s70 = sphi 0, %s70
    %s72 = sphi 0, %s70
    %s73 = sphi 0, %s72
    %s87 = sphi 0, %s73
    %s91 = sphi 0, %s91
    %s93 = sphi 0, %s91
    %s94 = sphi 0, %s93
    %s108 = sphi 0, %s94
    %s112 = sphi 0, %s112
    %s114 = sphi 0, %s112
    %s115 = sphi 0, %s114
    %s129 = sphi 0, %s115
    %s133 = sphi 0, %s133
    %s135 = sphi 0, %s133
    %s136 = sphi 0, %s135
    %s150 = sphi 0, %s136
    %s154 = sphi 0, %s154
    %s156 = sphi 0, %s154
    %s157 = sphi 0, %s156
    %s171 = sphi 0, %s157
    %s175 = sphi 0, %s175
    %s177 = sphi 0, %s175
    %s178 = sphi 0, %s177
    %s192 = sphi 0, %s178
    %s196 = sphi 0, %s196
    %s198 = sphi 0, %s196
    %s199 = sphi 0, %s198
    %s213 = sphi 0, %s199
    %s219 = sphi 0, %s221
    %s222 = sphi 0, %s219
    %s223 = sphi 0, %s222
    %s239 = sphi 0, %s223
  $region4: #{model_forward.1} parent=0 // loop_header_branch
    %18 = sbr.rel (%p16) target = $region8
  $region5: #{model_forward.1} parent=0 // loop_body
    %s20 = ssub.s32 %s15, 1
    %s21 = ssub.s32 %s15, 2
    %s22 = sadd.s32 %s15, 1
    %s23 = ssub.s32 %s15, %s22
    %p24 = scmp.eq.s32.totalorder %s23, 0
    %s26 = sadd.s32 %s25, 1
    %s27 = scalar_select %p24, %s25, %s26
    %p30 = pneg %p24
    %p31 = scmp.eq.s32.totalorder %s15, 1
    %p32 = por %p30, %p31
    %p33 = scmp.ne.s32.totalorder %s25, %s28
    %p34 = scmp.eq.s32.totalorder %s15, 0
    %p35 = por %p33, %p34
    %p36 = scmp.ne.s32.totalorder %s25, %s28
    %p37 = scmp.eq.s32.totalorder %s20, 1
    %p38 = por %p36, %p37
    %p39 = scmp.ne.s32.totalorder %s28, %s29
    %p40 = scmp.eq.s32.totalorder %s20, 0
    %p41 = por %p39, %p40
    %p42 = scmp.ne.s32.totalorder %s28, %s29
    %p43 = scmp.eq.s32.totalorder %s21, 1
    %p44 = por %p42, %p43
    %p46 = scmp.ne.s32.totalorder %s29, %s45
    %p47 = scmp.eq.s32.totalorder %s21, 0
    %p48 = por %p46, %p47
    %s50 = sadd.s32 %s49, 1
    %p53 = scmp.eq.s32.totalorder %s15, 1
    %p54 = scmp.ne.s32.totalorder %s49, %s51
    %p55 = scmp.eq.s32.totalorder %s15, 0
    %p56 = por %p54, %p55
    %p57 = scmp.ne.s32.totalorder %s49, %s51
    %p58 = scmp.eq.s32.totalorder %s20, 1
    %p59 = por %p57, %p58
    %p60 = scmp.ne.s32.totalorder %s51, %s52
    %p61 = scmp.eq.s32.totalorder %s20, 0
    %p62 = por %p60, %p61
    %p63 = scmp.ne.s32.totalorder %s51, %s52
    %p64 = scmp.eq.s32.totalorder %s21, 1
    %p65 = por %p63, %p64
    %p67 = scmp.ne.s32.totalorder %s52, %s66
    %p68 = scmp.eq.s32.totalorder %s21, 0
    %p69 = por %p67, %p68
    %s71 = sadd.s32 %s70, 1
    %p74 = scmp.eq.s32.totalorder %s15, 1
    %p75 = scmp.ne.s32.totalorder %s70, %s72
    %p76 = scmp.eq.s32.totalorder %s15, 0
    %p77 = por %p75, %p76
    %p78 = scmp.ne.s32.totalorder %s70, %s72
    %p79 = scmp.eq.s32.totalorder %s20, 1
    %p80 = por %p78, %p79
    %p81 = scmp.ne.s32.totalorder %s72, %s73
    %p82 = scmp.eq.s32.totalorder %s20, 0
    %p83 = por %p81, %p82
    %p84 = scmp.ne.s32.totalorder %s72, %s73
    %p85 = scmp.eq.s32.totalorder %s21, 1
    %p86 = por %p84, %p85
    %p88 = scmp.ne.s32.totalorder %s73, %s87
    %p89 = scmp.eq.s32.totalorder %s21, 0
    %p90 = por %p88, %p89
    %s92 = sadd.s32 %s91, 1
    %p95 = scmp.eq.s32.totalorder %s15, 1
    %p96 = scmp.ne.s32.totalorder %s91, %s93
    %p97 = scmp.eq.s32.totalorder %s15, 0
    %p98 = por %p96, %p97
    %p99 = scmp.ne.s32.totalorder %s91, %s93
    %p100 = scmp.eq.s32.totalorder %s20, 1
    %p101 = por %p99, %p100
    %p102 = scmp.ne.s32.totalorder %s93, %s94
    %p103 = scmp.eq.s32.totalorder %s20, 0
    %p104 = por %p102, %p103
    %p105 = scmp.ne.s32.totalorder %s93, %s94
    %p106 = scmp.eq.s32.totalorder %s21, 1
    %p107 = por %p105, %p106
    %p109 = scmp.ne.s32.totalorder %s94, %s108
    %p110 = scmp.eq.s32.totalorder %s21, 0
    %p111 = por %p109, %p110
    %s113 = sadd.s32 %s112, 1
    %p116 = scmp.eq.s32.totalorder %s15, 1
    %p117 = scmp.ne.s32.totalorder %s112, %s114
    %p118 = scmp.eq.s32.totalorder %s15, 0
    %p119 = por %p117, %p118
    %p120 = scmp.ne.s32.totalorder %s112, %s114
    %p121 = scmp.eq.s32.totalorder %s20, 1
    %p122 = por %p120, %p121
    %p123 = scmp.ne.s32.totalorder %s114, %s115
    %p124 = scmp.eq.s32.totalorder %s20, 0
    %p125 = por %p123, %p124
    %p126 = scmp.ne.s32.totalorder %s114, %s115
    %p127 = scmp.eq.s32.totalorder %s21, 1
    %p128 = por %p126, %p127
    %p130 = scmp.ne.s32.totalorder %s115, %s129
    %p131 = scmp.eq.s32.totalorder %s21, 0
    %p132 = por %p130, %p131
    %s134 = sadd.s32 %s133, 1
    %p137 = scmp.eq.s32.totalorder %s15, 1
    %p138 = scmp.ne.s32.totalorder %s133, %s135
    %p139 = scmp.eq.s32.totalorder %s15, 0
    %p140 = por %p138, %p139
    %p141 = scmp.ne.s32.totalorder %s133, %s135
    %p142 = scmp.eq.s32.totalorder %s20, 1
    %p143 = por %p141, %p142
    %p144 = scmp.ne.s32.totalorder %s135, %s136
    %p145 = scmp.eq.s32.totalorder %s20, 0
    %p146 = por %p144, %p145
    %p147 = scmp.ne.s32.totalorder %s135, %s136
    %p148 = scmp.eq.s32.totalorder %s21, 1
    %p149 = por %p147, %p148
    %p151 = scmp.ne.s32.totalorder %s136, %s150
    %p152 = scmp.eq.s32.totalorder %s21, 0
    %p153 = por %p151, %p152
    %s155 = sadd.s32 %s154, 1
    %p158 = scmp.eq.s32.totalorder %s15, 1
    %p159 = scmp.ne.s32.totalorder %s154, %s156
    %p160 = scmp.eq.s32.totalorder %s15, 0
    %p161 = por %p159, %p160
    %p162 = scmp.ne.s32.totalorder %s154, %s156
    %p163 = scmp.eq.s32.totalorder %s20, 1
    %p164 = por %p162, %p163
    %p165 = scmp.ne.s32.totalorder %s156, %s157
    %p166 = scmp.eq.s32.totalorder %s20, 0
    %p167 = por %p165, %p166
    %p168 = scmp.ne.s32.totalorder %s156, %s157
    %p169 = scmp.eq.s32.totalorder %s21, 1
    %p170 = por %p168, %p169
    %p172 = scmp.ne.s32.totalorder %s157, %s171
    %p173 = scmp.eq.s32.totalorder %s21, 0
    %p174 = por %p172, %p173
    %s176 = sadd.s32 %s175, 1
    %p179 = scmp.eq.s32.totalorder %s15, 1
    %p180 = scmp.ne.s32.totalorder %s175, %s177
    %p181 = scmp.eq.s32.totalorder %s15, 0
    %p182 = por %p180, %p181
    %p183 = scmp.ne.s32.totalorder %s175, %s177
    %p184 = scmp.eq.s32.totalorder %s20, 1
    %p185 = por %p183, %p184
    %p186 = scmp.ne.s32.totalorder %s177, %s178
    %p187 = scmp.eq.s32.totalorder %s20, 0
    %p188 = por %p186, %p187
    %p189 = scmp.ne.s32.totalorder %s177, %s178
    %p190 = scmp.eq.s32.totalorder %s21, 1
    %p191 = por %p189, %p190
    %p193 = scmp.ne.s32.totalorder %s178, %s192
    %p194 = scmp.eq.s32.totalorder %s21, 0
    %p195 = por %p193, %p194
    %s197 = sadd.s32 %s196, 1
    %p200 = scmp.eq.s32.totalorder %s15, 1
    %p201 = scmp.ne.s32.totalorder %s196, %s198
    %p202 = scmp.eq.s32.totalorder %s15, 0
    %p203 = por %p201, %p202
    %p204 = scmp.ne.s32.totalorder %s196, %s198
    %p205 = scmp.eq.s32.totalorder %s20, 1
    %p206 = por %p204, %p205
    %p207 = scmp.ne.s32.totalorder %s198, %s199
    %p208 = scmp.eq.s32.totalorder %s20, 0
    %p209 = por %p207, %p208
    %p210 = scmp.ne.s32.totalorder %s198, %s199
    %p211 = scmp.eq.s32.totalorder %s21, 1
    %p212 = por %p210, %p211
    %p214 = scmp.ne.s32.totalorder %s199, %s213
    %p215 = scmp.eq.s32.totalorder %s21, 0
    %p216 = por %p214, %p215
    %s217 = ssub.s32 %s15, %s22
    %p218 = scmp.eq.s32.totalorder %s217, 0
    %s220 = sadd.s32 %s219, 1
    %s221 = scalar_select %p218, %s219, %s220
    %p224 = pneg %p218
    %p225 = scmp.eq.s32.totalorder %s15, 1
    %p226 = por %p224, %p225
    %p227 = scmp.ne.s32.totalorder %s219, %s222
    %p228 = scmp.eq.s32.totalorder %s15, 0
    %p229 = por %p227, %p228
    %p230 = scmp.ne.s32.totalorder %s219, %s222
    %p231 = scmp.eq.s32.totalorder %s20, 1
    %p232 = por %p230, %p231
    %p233 = scmp.ne.s32.totalorder %s222, %s223
    %p234 = scmp.eq.s32.totalorder %s20, 0
    %p235 = por %p233, %p234
    %p236 = scmp.ne.s32.totalorder %s222, %s223
    %p237 = scmp.eq.s32.totalorder %s21, 1
    %p238 = por %p236, %p237
    %p240 = scmp.ne.s32.totalorder %s223, %s239
    %p241 = scmp.eq.s32.totalorder %s21, 0
    %p242 = por %p240, %p241
    %p243 = scmp.le.s32.totalorder 1, %s15
    %p244 = scmp.lt.s32.totalorder %s15, 3
    %p245 = pnand %p243, %p244
    %p246 = pneg %p245
    // Predicated region
    $region9: #{model_forward.1} parent=5 // pred_check
      _
    $region10: #{model_forward.1} parent=5 // pred_check_branch
      %248 = sbr.rel (%p245) target = $region12
    $region11: #{model_forward.1} parent=5 // pred_region
      %s249 = ssub.s32 %s15, 1
      // Predicated region
      $region13: #{model_forward.1} parent=11 // pred_check
        %p250 = pneg %p62
      $region14: #{model_forward.1} parent=11 // pred_check_branch
        %252 = sbr.rel (%p250) target = $region16
      $region15: #{model_forward.1} parent=11 // pred_region
        _
      $region16: #{model_forward.1} parent=11 // pred_fallthru
        _
      // Predicated region
      $region17: #{model_forward.1} parent=11 // pred_check
        %p253 = pneg %p83
      $region18: #{model_forward.1} parent=11 // pred_check_branch
        %255 = sbr.rel (%p253) target = $region20
      $region19: #{model_forward.1} parent=11 // pred_region
        _
      $region20: #{model_forward.1} parent=11 // pred_fallthru
        _
      // Predicated region
      $region21: #{model_forward.1} parent=11 // pred_check
        %p256 = pneg %p104
      $region22: #{model_forward.1} parent=11 // pred_check_branch
        %258 = sbr.rel (%p256) target = $region24
      $region23: #{model_forward.1} parent=11 // pred_region
        _
      $region24: #{model_forward.1} parent=11 // pred_fallthru
        _
      // Predicated region
      $region25: #{model_forward.1} parent=11 // pred_check
        %p259 = pneg %p125
      $region26: #{model_forward.1} parent=11 // pred_check_branch
        %261 = sbr.rel (%p259) target = $region28
      $region27: #{model_forward.1} parent=11 // pred_region
        _
      $region28: #{model_forward.1} parent=11 // pred_fallthru
        _
      // Predicated region
      $region29: #{model_forward.1} parent=11 // pred_check
        %p262 = pneg %p146
      $region30: #{model_forward.1} parent=11 // pred_check_branch
        %264 = sbr.rel (%p262) target = $region32
      $region31: #{model_forward.1} parent=11 // pred_region
        _
      $region32: #{model_forward.1} parent=11 // pred_fallthru
        _
      // Predicated region
      $region33: #{model_forward.1} parent=11 // pred_check
        %p265 = pneg %p167
      $region34: #{model_forward.1} parent=11 // pred_check_branch
        %267 = sbr.rel (%p265) target = $region36
      $region35: #{model_forward.1} parent=11 // pred_region
        _
      $region36: #{model_forward.1} parent=11 // pred_fallthru
        _
      // Predicated region
      $region37: #{model_forward.1} parent=11 // pred_check
        %p268 = pneg %p188
      $region38: #{model_forward.1} parent=11 // pred_check_branch
        %270 = sbr.rel (%p268) target = $region40
      $region39: #{model_forward.1} parent=11 // pred_region
        _
      $region40: #{model_forward.1} parent=11 // pred_fallthru
        _
      // Predicated region
      $region41: #{model_forward.1} parent=11 // pred_check
        %p271 = pneg %p209
      $region42: #{model_forward.1} parent=11 // pred_check_branch
        %273 = sbr.rel (%p271) target = $region44
      $region43: #{model_forward.1} parent=11 // pred_region
        _
      $region44: #{model_forward.1} parent=11 // pred_fallthru
        _
    $region12: #{model_forward.1} parent=5 // pred_fallthru
      _
    %p274 = scmp.lt.s32.totalorder %s15, 2
    // Predicated region
    $region45: #{model_forward.1} parent=5 // pred_check
      %p275 = pneg %p274
    $region46: #{model_forward.1} parent=5 // pred_check_branch
      %277 = sbr.rel (%p275) target = $region48
    $region47: #{model_forward.1} parent=5 // pred_region
      // Predicated region
      $region49: #{model_forward.1} parent=47 // pred_check
        %p278 = pneg %p35
      $region50: #{model_forward.1} parent=47 // pred_check_branch
        %280 = sbr.rel (%p278) target = $region52
      $region51: #{model_forward.1} parent=47 // pred_region
        %p281 = scmp.lt.s32.totalorder %s15, 1
        %s282 = scalar_select %p281, %s15, 1
        %s283 = smul.addr %s282, 32
        %s284 = smul.addr %s283, 4
        %s285 = scalar_lea.vmem %s0, %s284
      $region52: #{model_forward.1} parent=47 // pred_fallthru
        _
    $region48: #{model_forward.1} parent=5 // pred_fallthru
      _
    %p286 = scmp.le.s32.totalorder 1, %s15
    %p287 = scmp.lt.s32.totalorder %s15, 3
    %p288 = pnand %p286, %p287
    %p289 = pneg %p288
    // Predicated region
    $region53: #{model_forward.1} parent=5 // pred_check
      _
    $region54: #{model_forward.1} parent=5 // pred_check_branch
      %291 = sbr.rel (%p288) target = $region56
    $region55: #{model_forward.1} parent=5 // pred_region
      %s292 = ssub.s32 %s15, 1
      %p293 = scmp.lt.s32.totalorder %s20, 1
      %s294 = scalar_select %p293, %s20, 1
      %s295 = smul.addr %s294, 32
      %s296 = smul.addr %s295, 4
      %s297 = scalar_lea.vmem %s0, %s296
      %p298 = pneg %p41
      %p299 = pneg %p38
      %p300 = pneg %p62
      %p301 = pneg %p59
      %p302 = pneg %p83
      %p303 = pneg %p80
      %p304 = pneg %p104
      %p305 = pneg %p101
      %p306 = pneg %p125
      %p307 = pneg %p122
      %p308 = pneg %p146
      %p309 = pneg %p143
      %p310 = pneg %p167
      %p311 = pneg %p164
      %p312 = pneg %p188
      %p313 = pneg %p185
      %p314 = pneg %p209
      %p315 = pneg %p206
      %p316 = pneg %p235
      %p317 = pneg %p232
      %p318 = scmp.lt.s32.totalorder %s20, 1
      %s319 = scalar_select %p318, %s20, 1
      %s320 = smul.addr %s319, 8
      %s321 = smul.addr %s320, 8
      %s322 = scalar_lea.vmem %s9, %s321
      %p323 = scmp.lt.s32.totalorder %s20, 1
      %s324 = scalar_select %p323, %s20, 1
      %s325 = smul.addr %s324, 32
      %s326 = smul.addr %s325, 4
      %s327 = scalar_lea.vmem %s0, %s326
      %p328 = scmp.lt.s32.totalorder %s20, 1
      %s329 = scalar_select %p328, %s20, 1
      %s330 = smul.addr %s329, 8
      %s331 = smul.addr %s330, 8
      %s332 = scalar_lea.vmem %s9, %s331
      %v334 = vld [vmem:[%s327] sm:$0xf]
      %v335 = vld [vmem:[%s327 + $0x4] sm:$0xf]
      %v336 = vld [vmem:[%s327 + $0x8] sm:$0xf]
      %v337 = vld [vmem:[%s327 + $0xc] sm:$0xf]
      %v338 = vld [vmem:[%s327 + $0x10] sm:$0xf]
      %v339 = vld [vmem:[%s327 + $0x14] sm:$0xf]
      %v340 = vld [vmem:[%s327 + $0x18] sm:$0xf]
      %v341 = vld [vmem:[%s327 + $0x1c] sm:$0xf]
      %v342 = vld [vmem:[%s327 + $0x20] sm:$0xf]
      %v343 = vld [vmem:[%s327 + $0x24] sm:$0xf]
      %v344 = vld [vmem:[%s327 + $0x28] sm:$0xf]
      %v345 = vld [vmem:[%s327 + $0x2c] sm:$0xf]
      %v346 = vld [vmem:[%s327 + $0x30] sm:$0xf]
      %v347 = vld [vmem:[%s327 + $0x34] sm:$0xf]
      %v348 = vld [vmem:[%s327 + $0x38] sm:$0xf]
      %v349 = vld [vmem:[%s327 + $0x3c] sm:$0xf]
      %v350 = vld [vmem:[%s327 + $0x40] sm:$0xf]
      %v351 = vld [vmem:[%s327 + $0x44] sm:$0xf]
      %v352 = vld [vmem:[%s327 + $0x48] sm:$0xf]
      %v353 = vld [vmem:[%s327 + $0x4c] sm:$0xf]
      %v354 = vld [vmem:[%s327 + $0x50] sm:$0xf]
      %v355 = vld [vmem:[%s327 + $0x54] sm:$0xf]
      %v356 = vld [vmem:[%s327 + $0x58] sm:$0xf]
      %v357 = vld [vmem:[%s327 + $0x5c] sm:$0xf]
      %v358 = vld [vmem:[%s327 + $0x60] sm:$0xf]
      %v359 = vld [vmem:[%s327 + $0x64] sm:$0xf]
      %v360 = vld [vmem:[%s327 + $0x68] sm:$0xf]
      %v361 = vld [vmem:[%s327 + $0x6c] sm:$0xf]
      %v362 = vld [vmem:[%s327 + $0x70] sm:$0xf]
      %v363 = vld [vmem:[%s327 + $0x74] sm:$0xf]
      %v364 = vld [vmem:[%s327 + $0x78] sm:$0xf]
      %v365 = vld [vmem:[%s327 + $0x7c] sm:$0xf]
      %v366 = vld [vmem:[%s1] sm:$0xf]
      %v367 = vld [vmem:[%s1 + $0x4] sm:$0xf]
      %v368 = vld [vmem:[%s1 + $0x8] sm:$0xf]
      %v369 = vld [vmem:[%s1 + $0xc] sm:$0xf]
      %v370 = vld [vmem:[%s1 + $0x10] sm:$0x3]
      %v371 = vld [vmem:[%s2] sm:$0x1]
      %v373 = vlaneseq
      %v374 = vshrl.u32 %v373, 7
      %v375 = vsub.s32 0, %v374
      %v376 = vrot.slane %v371, %v375
      %v410 = vunpack.c.l.b16 %v334
      %v411 = vunpack.c.l.b16 %v335
      %v412 = vunpack.c.l.b16 %v336
      %v413 = vunpack.c.l.b16 %v337
      %v414 = vunpack.c.l.b16 %v338
      %v415 = vunpack.c.l.b16 %v339
      %v416 = vunpack.c.l.b16 %v340
      %v417 = vunpack.c.l.b16 %v341
      %v418 = vunpack.c.l.b16 %v342
      %v419 = vunpack.c.l.b16 %v343
      %v420 = vunpack.c.l.b16 %v344
      %v421 = vunpack.c.l.b16 %v345
      %v422 = vunpack.c.l.b16 %v346
      %v423 = vunpack.c.l.b16 %v347
      %v424 = vunpack.c.l.b16 %v348
      %v425 = vunpack.c.l.b16 %v349
      %v426 = vunpack.c.l.b16 %v350
      %v427 = vunpack.c.l.b16 %v351
      %v428 = vunpack.c.l.b16 %v352
      %v429 = vunpack.c.l.b16 %v353
      %v430 = vunpack.c.l.b16 %v354
      %v431 = vunpack.c.l.b16 %v355
      %v432 = vunpack.c.l.b16 %v356
      %v433 = vunpack.c.l.b16 %v357
      %v434 = vunpack.c.l.b16 %v358
      %v435 = vunpack.c.l.b16 %v359
      %v436 = vunpack.c.l.b16 %v360
      %v437 = vunpack.c.l.b16 %v361
      %v438 = vunpack.c.l.b16 %v362
      %v439 = vunpack.c.l.b16 %v363
      %v440 = vunpack.c.l.b16 %v364
      %v441 = vunpack.c.l.b16 %v365
      %v442 = vpack.c.b16 %v411, %v410
      %v443 = vpack.c.b16 %v413, %v412
      %v444 = vpack.c.b16 %v415, %v414
      %v445 = vpack.c.b16 %v417, %v416
      %v446 = vpack.c.b16 %v419, %v418
      %v447 = vpack.c.b16 %v421, %v420
      %v448 = vpack.c.b16 %v423, %v422
      %v449 = vpack.c.b16 %v425, %v424
      %v450 = vpack.c.b16 %v427, %v426
      %v451 = vpack.c.b16 %v429, %v428
      %v452 = vpack.c.b16 %v431, %v430
      %v453 = vpack.c.b16 %v433, %v432
      %v454 = vpack.c.b16 %v435, %v434
      %v455 = vpack.c.b16 %v437, %v436
      %v456 = vpack.c.b16 %v439, %v438
      %v457 = vpack.c.b16 %v441, %v440
      %v463 = vunpack.c.l.b16 %v366
      %v464 = vunpack.c.l.b16 %v367
      %v465 = vunpack.c.l.b16 %v368
      %v466 = vunpack.c.l.b16 %v369
      %v467 = vunpack.c.l.b16 %v370
      %v468 = vpack.c.b16 %v464, %v463
      %v469 = vpack.c.b16 %v466, %v465
      %v470 = vpack.c.b16 %v467, %v467
      %vm473 = vcmask 293888
      %v475 = vsel %vm473, %v442, 0
      %v478 = vsel %vm473, %v443, 0
      %v481 = vsel %vm473, %v444, 0
      %v484 = vsel %vm473, %v445, 0
      %v487 = vsel %vm473, %v446, 0
      %v490 = vsel %vm473, %v447, 0
      %v493 = vsel %vm473, %v448, 0
      %v496 = vsel %vm473, %v449, 0
      %v499 = vsel %vm473, %v450, 0
      %v502 = vsel %vm473, %v451, 0
      %v505 = vsel %vm473, %v452, 0
      %v508 = vsel %vm473, %v453, 0
      %v511 = vsel %vm473, %v454, 0
      %v514 = vsel %vm473, %v455, 0
      %v517 = vsel %vm473, %v456, 0
      %v520 = vsel %vm473, %v457, 0
      %vm522 = vcmask 1041408
      %v524 = vsel %vm522, %v470, 0
      %526 = vmatprep.subr.bf16.mxu0 0
      %527 = vmatpush1.bf16.msra.mxu0 %v468
      %528 = vmatprep.subr.bf16.mxu0 0
      %529 = vmatpush1.bf16.msra.mxu0 %v469
      %530 = vmatprep.subr.bf16.mxu0 0
      %531 = vmatpush1.bf16.msra.mxu0 %v524
      %532 = vmatprep.subr.bf16.mxu0 0
      %533 = vmatpush1.bf16.msra.mxu0 0
      %534 = vmatprep.subr.bf16.mxu0 0
      %535 = vmatpush1.bf16.msra.mxu0 0
      %536 = vmatprep.subr.bf16.mxu0 0
      %537 = vmatpush1.bf16.msra.mxu0 0
      %538 = vmatprep.subr.bf16.mxu0 0
      %539 = vmatpush1.bf16.msra.mxu0 0
      %540 = vmatprep.subr.bf16.mxu0 0
      %541 = vmatpush1.bf16.msra.mxu0 0
      %542 = vmatprep.subr.bf16.mxu0 0
      %543 = vmatpush1.bf16.msra.mxu0 0
      %544 = vmatprep.subr.bf16.mxu0 0
      %545 = vmatpush1.bf16.msra.mxu0 0
      %546 = vmatprep.subr.bf16.mxu0 0
      %547 = vmatpush1.bf16.msra.mxu0 0
      %548 = vmatprep.subr.bf16.mxu0 0
      %549 = vmatpush1.bf16.msra.mxu0 0
      %550 = vmatprep.subr.bf16.mxu0 0
      %551 = vmatpush1.bf16.msra.mxu0 0
      %552 = vmatprep.subr.bf16.mxu0 0
      %553 = vmatpush1.bf16.msra.mxu0 0
      %554 = vmatprep.subr.bf16.mxu0 0
      %555 = vmatpush1.bf16.msra.mxu0 0
      %556 = vmatprep.subr.bf16.mxu0 0
      %557 = vmatpush1.bf16.msra.mxu0 0
      %558 = vmatprep.mubr.bf16.mxu0 0
      %559 = vmatmul.mubr.bf16.gmra.mrb[0].mxu0 %v475
      %v560 = vpop.f32.mrb[0].mxu0
      %v561 = vadd.f32 %v376, %v560
      %v562 = vpop.f32.mrb[0].mxu0
      %v563 = vpop.f32.mrb[0].mxu0
      %v564 = vadd.f32 %v376, %v563
      %v565 = vpop.f32.mrb[0].mxu0
      %566 = vmatprep.mubr.bf16.mxu0 0
      %567 = vmatmul.mubr.bf16.gmra.mrb[0].mxu0 %v478
      %v568 = vpop.f32.mrb[0].mxu0
      %v569 = vadd.f32 %v376, %v568
      %v570 = vpop.f32.mrb[0].mxu0
      %v571 = vpop.f32.mrb[0].mxu0
      %v572 = vadd.f32 %v376, %v571
      %v573 = vpop.f32.mrb[0].mxu0
      %574 = vmatprep.mubr.bf16.mxu0 0
      %575 = vmatmul.mubr.bf16.gmra.mrb[0].mxu0 %v481
      %v576 = vpop.f32.mrb[0].mxu0
      %v577 = vadd.f32 %v376, %v576
      %v578 = vpop.f32.mrb[0].mxu0
      %v579 = vpop.f32.mrb[0].mxu0
      %v580 = vadd.f32 %v376, %v579
      %v581 = vpop.f32.mrb[0].mxu0
      %582 = vmatprep.mubr.bf16.mxu0 0
      %583 = vmatmul.mubr.bf16.gmra.mrb[0].mxu0 %v484
      %v584 = vpop.f32.mrb[0].mxu0
      %v585 = vadd.f32 %v376, %v584
      %v586 = vpop.f32.mrb[0].mxu0
      %v587 = vpop.f32.mrb[0].mxu0
      %v588 = vadd.f32 %v376, %v587
      %v589 = vpop.f32.mrb[0].mxu0
      %590 = vmatprep.mubr.bf16.mxu0 0
      %591 = vmatmul.mubr.bf16.gmra.mrb[0].mxu0 %v487
      %v592 = vpop.f32.mrb[0].mxu0
      %v593 = vadd.f32 %v376, %v592
      %v594 = vpop.f32.mrb[0].mxu0
      %v595 = vpop.f32.mrb[0].mxu0
      %v596 = vadd.f32 %v376, %v595
      %v597 = vpop.f32.mrb[0].mxu0
      %598 = vmatprep.mubr.bf16.mxu0 0
      %599 = vmatmul.mubr.bf16.gmra.mrb[0].mxu0 %v490
      %v600 = vpop.f32.mrb[0].mxu0
      %v601 = vadd.f32 %v376, %v600
      %v602 = vpop.f32.mrb[0].mxu0
      %v603 = vpop.f32.mrb[0].mxu0
      %v604 = vadd.f32 %v376, %v603
      %v605 = vpop.f32.mrb[0].mxu0
      %606 = vmatprep.mubr.bf16.mxu0 0
      %607 = vmatmul.mubr.bf16.gmra.mrb[0].mxu0 %v493
      %v608 = vpop.f32.mrb[0].mxu0
      %v609 = vadd.f32 %v376, %v608
      %v610 = vpop.f32.mrb[0].mxu0
      %v611 = vpop.f32.mrb[0].mxu0
      %v612 = vadd.f32 %v376, %v611
      %v613 = vpop.f32.mrb[0].mxu0
      %614 = vmatprep.mubr.bf16.mxu0 0
      %615 = vmatmul.mubr.bf16.gmra.mrb[0].mxu0 %v496
      %v616 = vpop.f32.mrb[0].mxu0
      %v617 = vadd.f32 %v376, %v616
      %v618 = vpop.f32.mrb[0].mxu0
      %v619 = vpop.f32.mrb[0].mxu0
      %v620 = vadd.f32 %v376, %v619
      %v621 = vpop.f32.mrb[0].mxu0
      %622 = vmatprep.mubr.bf16.mxu0 0
      %623 = vmatmul.mubr.bf16.gmra.mrb[0].mxu0 %v499
      %v624 = vpop.f32.mrb[0].mxu0
      %v625 = vadd.f32 %v376, %v624
      %v626 = vpop.f32.mrb[0].mxu0
      %v627 = vpop.f32.mrb[0].mxu0
      %v628 = vadd.f32 %v376, %v627
      %v629 = vpop.f32.mrb[0].mxu0
      %630 = vmatprep.mubr.bf16.mxu0 0
      %631 = vmatmul.mubr.bf16.gmra.mrb[0].mxu0 %v502
      %v632 = vpop.f32.mrb[0].mxu0
      %v633 = vadd.f32 %v376, %v632
      %v634 = vpop.f32.mrb[0].mxu0
      %v635 = vpop.f32.mrb[0].mxu0
      %v636 = vadd.f32 %v376, %v635
      %v637 = vpop.f32.mrb[0].mxu0
      %638 = vmatprep.mubr.bf16.mxu0 0
      %639 = vmatmul.mubr.bf16.gmra.mrb[0].mxu0 %v505
      %v640 = vpop.f32.mrb[0].mxu0
      %v641 = vadd.f32 %v376, %v640
      %v642 = vpop.f32.mrb[0].mxu0
      %v643 = vpop.f32.mrb[0].mxu0
      %v644 = vadd.f32 %v376, %v643
      %v645 = vpop.f32.mrb[0].mxu0
      %646 = vmatprep.mubr.bf16.mxu0 0
      %647 = vmatmul.mubr.bf16.gmra.mrb[0].mxu0 %v508
      %v648 = vpop.f32.mrb[0].mxu0
      %v649 = vadd.f32 %v376, %v648
      %v650 = vpop.f32.mrb[0].mxu0
      %v651 = vpop.f32.mrb[0].mxu0
      %v652 = vadd.f32 %v376, %v651
      %v653 = vpop.f32.mrb[0].mxu0
      %654 = vmatprep.mubr.bf16.mxu0 0
      %655 = vmatmul.mubr.bf16.gmra.mrb[0].mxu0 %v511
      %v656 = vpop.f32.mrb[0].mxu0
      %v657 = vadd.f32 %v376, %v656
      %v658 = vpop.f32.mrb[0].mxu0
      %v659 = vpop.f32.mrb[0].mxu0
      %v660 = vadd.f32 %v376, %v659
      %v661 = vpop.f32.mrb[0].mxu0
      %662 = vmatprep.mubr.bf16.mxu0 0
      %663 = vmatmul.mubr.bf16.gmra.mrb[0].mxu0 %v514
      %v664 = vpop.f32.mrb[0].mxu0
      %v665 = vadd.f32 %v376, %v664
      %v666 = vpop.f32.mrb[0].mxu0
      %v667 = vpop.f32.mrb[0].mxu0
      %v668 = vadd.f32 %v376, %v667
      %v669 = vpop.f32.mrb[0].mxu0
      %670 = vmatprep.mubr.bf16.mxu0 0
      %671 = vmatmul.mubr.bf16.gmra.mrb[0].mxu0 %v517
      %v672 = vpop.f32.mrb[0].mxu0
      %v673 = vadd.f32 %v376, %v672
      %v674 = vpop.f32.mrb[0].mxu0
      %v675 = vpop.f32.mrb[0].mxu0
      %v676 = vadd.f32 %v376, %v675
      %v677 = vpop.f32.mrb[0].mxu0
      %678 = vmatprep.mubr.bf16.mxu0 0
      %679 = vmatmul.mubr.bf16.gmra.mrb[0].mxu0 %v520
      %v680 = vpop.f32.mrb[0].mxu0
      %v681 = vadd.f32 %v376, %v680
      %v682 = vpop.f32.mrb[0].mxu0
      %v683 = vpop.f32.mrb[0].mxu0
      %v684 = vadd.f32 %v376, %v683
      %v685 = vpop.f32.mrb[0].mxu0
      %686 = vdwg.mxu0
      %v687 = vmax.f32 %v561, 0.0
      %v688 = vmax.f32 %v564, 0.0
      %v689 = vmax.f32 %v569, 0.0
      %v690 = vmax.f32 %v572, 0.0
      %v691 = vmax.f32 %v577, 0.0
      %v692 = vmax.f32 %v580, 0.0
      %v693 = vmax.f32 %v585, 0.0
      %v694 = vmax.f32 %v588, 0.0
      %v695 = vmax.f32 %v593, 0.0
      %v696 = vmax.f32 %v596, 0.0
      %v697 = vmax.f32 %v601, 0.0
      %v698 = vmax.f32 %v604, 0.0
      %v699 = vmax.f32 %v609, 0.0
      %v700 = vmax.f32 %v612, 0.0
      %v701 = vmax.f32 %v617, 0.0
      %v702 = vmax.f32 %v620, 0.0
      %v703 = vmax.f32 %v625, 0.0
      %v704 = vmax.f32 %v628, 0.0
      %v705 = vmax.f32 %v633, 0.0
      %v706 = vmax.f32 %v636, 0.0
      %v707 = vmax.f32 %v641, 0.0
      %v708 = vmax.f32 %v644, 0.0
      %v709 = vmax.f32 %v649, 0.0
      %v710 = vmax.f32 %v652, 0.0
      %v711 = vmax.f32 %v657, 0.0
      %v712 = vmax.f32 %v660, 0.0
      %v713 = vmax.f32 %v665, 0.0
      %v714 = vmax.f32 %v668, 0.0
      %v715 = vmax.f32 %v673, 0.0
      %v716 = vmax.f32 %v676, 0.0
      %v717 = vmax.f32 %v681, 0.0
      %v718 = vmax.f32 %v684, 0.0
      %v719 = vld [vmem:[%s3] sm:$0xff]
      %v720 = vld [vmem:[%s3 + $0x8] sm:$0xff]
      %v721 = vld [vmem:[%s3 + $0x10] sm:$0xff]
      %v722 = vld [vmem:[%s3 + $0x18] sm:$0xff]
      %v723 = vld [vmem:[%s3 + $0x20] sm:$0xff]
      %v724 = vld [vmem:[%s3 + $0x28] sm:$0xff]
      %v725 = vld [vmem:[%s3 + $0x30] sm:$0xff]
      %v726 = vld [vmem:[%s3 + $0x38] sm:$0xff]
      %v727 = vld [vmem:[%s3 + $0x40] sm:$0xff]
      %v728 = vld [vmem:[%s3 + $0x48] sm:$0xff]
      %v729 = vld [vmem:[%s3 + $0x50] sm:$0xff]
      %v730 = vld [vmem:[%s3 + $0x58] sm:$0xff]
      %v731 = vld [vmem:[%s3 + $0x60] sm:$0xff]
      %v732 = vld [vmem:[%s3 + $0x68] sm:$0xff]
      %v733 = vld [vmem:[%s3 + $0x70] sm:$0xff]
      %v734 = vld [vmem:[%s3 + $0x78] sm:$0xff]
      %v735 = vpack.c.bf16 %v688, %v687
      %v736 = vpack.c.bf16 %v690, %v689
      %v737 = vpack.c.bf16 %v692, %v691
      %v738 = vpack.c.bf16 %v694, %v693
      %v739 = vpack.c.bf16 %v696, %v695
      %v740 = vpack.c.bf16 %v698, %v697
      %v741 = vpack.c.bf16 %v700, %v699
      %v742 = vpack.c.bf16 %v702, %v701
      %v743 = vpack.c.bf16 %v704, %v703
      %v744 = vpack.c.bf16 %v706, %v705
      %v745 = vpack.c.bf16 %v708, %v707
      %v746 = vpack.c.bf16 %v710, %v709
      %v747 = vpack.c.bf16 %v712, %v711
      %v748 = vpack.c.bf16 %v714, %v713
      %v749 = vpack.c.bf16 %v716, %v715
      %v750 = vpack.c.bf16 %v718, %v717
      %v767 = vunpack.c.l.b16 %v719
      %v768 = vunpack.c.h.b16 %v719
      %v769 = vunpack.c.l.b16 %v720
      %v770 = vunpack.c.h.b16 %v720
      %v771 = vunpack.c.l.b16 %v721
      %v772 = vunpack.c.h.b16 %v721
      %v773 = vunpack.c.l.b16 %v722
      %v774 = vunpack.c.h.b16 %v722
      %v775 = vunpack.c.l.b16 %v723
      %v776 = vunpack.c.h.b16 %v723
      %v777 = vunpack.c.l.b16 %v724
      %v778 = vunpack.c.h.b16 %v724
      %v779 = vunpack.c.l.b16 %v725
      %v780 = vunpack.c.h.b16 %v725
      %v781 = vunpack.c.l.b16 %v726
      %v782 = vunpack.c.h.b16 %v726
      %v783 = vunpack.c.l.b16 %v727
      %v784 = vunpack.c.h.b16 %v727
      %v785 = vunpack.c.l.b16 %v728
      %v786 = vunpack.c.h.b16 %v728
      %v787 = vunpack.c.l.b16 %v729
      %v788 = vunpack.c.h.b16 %v729
      %v789 = vunpack.c.l.b16 %v730
      %v790 = vunpack.c.h.b16 %v730
      %v791 = vunpack.c.l.b16 %v731
      %v792 = vunpack.c.h.b16 %v731
      %v793 = vunpack.c.l.b16 %v732
      %v794 = vunpack.c.h.b16 %v732
      %v795 = vunpack.c.l.b16 %v733
      %v796 = vunpack.c.h.b16 %v733
      %v797 = vunpack.c.l.b16 %v734
      %v798 = vunpack.c.h.b16 %v734
      %v799 = vpack.c.b16 %v769, %v767
      %v800 = vpack.c.b16 %v770, %v768
      %v801 = vpack.c.b16 %v773, %v771
      %v802 = vpack.c.b16 %v774, %v772
      %v803 = vpack.c.b16 %v777, %v775
      %v804 = vpack.c.b16 %v778, %v776
      %v805 = vpack.c.b16 %v781, %v779
      %v806 = vpack.c.b16 %v782, %v780
      %v807 = vpack.c.b16 %v785, %v783
      %v808 = vpack.c.b16 %v786, %v784
      %v809 = vpack.c.b16 %v789, %v787
      %v810 = vpack.c.b16 %v790, %v788
      %v811 = vpack.c.b16 %v793, %v791
      %v812 = vpack.c.b16 %v794, %v792
      %v813 = vpack.c.b16 %v797, %v795
      %v814 = vpack.c.b16 %v798, %v796
      %831 = vmatprep.subr.bf16.mxu0 0
      %832 = vmatpush1.bf16.msra.mxu0 %v735
      %833 = vmatprep.subr.bf16.mxu0 0
      %834 = vmatpush1.bf16.msra.mxu0 %v736
      %835 = vmatprep.subr.bf16.mxu0 0
      %836 = vmatpush1.bf16.msra.mxu0 %v737
      %837 = vmatprep.subr.bf16.mxu0 0
      %838 = vmatpush1.bf16.msra.mxu0 %v738
      %839 = vmatprep.subr.bf16.mxu0 0
      %840 = vmatpush1.bf16.msra.mxu0 %v739
      %841 = vmatprep.subr.bf16.mxu0 0
      %842 = vmatpush1.bf16.msra.mxu0 %v740
      %843 = vmatprep.subr.bf16.mxu0 0
      %844 = vmatpush1.bf16.msra.mxu0 %v741
      %845 = vmatprep.subr.bf16.mxu0 0
      %846 = vmatpush1.bf16.msra.mxu0 %v742
      %847 = vmatprep.subr.bf16.mxu0 0
      %848 = vmatpush1.bf16.msra.mxu0 %v743
      %849 = vmatprep.subr.bf16.mxu0 0
      %850 = vmatpush1.bf16.msra.mxu0 %v744
      %851 = vmatprep.subr.bf16.mxu0 0
      %852 = vmatpush1.bf16.msra.mxu0 %v745
      %853 = vmatprep.subr.bf16.mxu0 0
      %854 = vmatpush1.bf16.msra.mxu0 %v746
      %855 = vmatprep.subr.bf16.mxu0 0
      %856 = vmatpush1.bf16.msra.mxu0 %v747
      %857 = vmatprep.subr.bf16.mxu0 0
      %858 = vmatpush1.bf16.msra.mxu0 %v748
      %859 = vmatprep.subr.bf16.mxu0 0
      %860 = vmatpush1.bf16.msra.mxu0 %v749
      %861 = vmatprep.subr.bf16.mxu0 0
      %862 = vmatpush1.bf16.msra.mxu0 %v750
      %863 = vmatprep.mubr.bf16.mxu0 %v800
      %864 = vmatmul.mubr.bf16.gmra.mrb[0].mxu0 %v799
      %v865 = vpop.f32.mrb[0].mxu0
      %v866 = vadd.f32 0.0, %v865
      %v867 = vpop.f32.mrb[0].mxu0
      %v868 = vpop.f32.mrb[0].mxu0
      %v869 = vadd.f32 0.0, %v868
      %v870 = vpop.f32.mrb[0].mxu0
      %871 = vmatprep.mubr.bf16.mxu0 %v802
      %872 = vmatmul.mubr.bf16.gmra.mrb[0].mxu0 %v801
      %v873 = vpop.f32.mrb[0].mxu0
      %v874 = vadd.f32 0.0, %v873
      %v875 = vpop.f32.mrb[0].mxu0
      %v876 = vpop.f32.mrb[0].mxu0
      %v877 = vadd.f32 0.0, %v876
      %v878 = vpop.f32.mrb[0].mxu0
      %879 = vmatprep.mubr.bf16.mxu0 %v804
      %880 = vmatmul.mubr.bf16.gmra.mrb[0].mxu0 %v803
      %v881 = vpop.f32.mrb[0].mxu0
      %v882 = vadd.f32 0.0, %v881
      %v883 = vpop.f32.mrb[0].mxu0
      %v884 = vpop.f32.mrb[0].mxu0
      %v885 = vadd.f32 0.0, %v884
      %v886 = vpop.f32.mrb[0].mxu0
      %887 = vmatprep.mubr.bf16.mxu0 %v806
      %888 = vmatmul.mubr.bf16.gmra.mrb[0].mxu0 %v805
      %v889 = vpop.f32.mrb[0].mxu0
      %v890 = vadd.f32 0.0, %v889
      %v891 = vpop.f32.mrb[0].mxu0
      %v892 = vpop.f32.mrb[0].mxu0
      %v893 = vadd.f32 0.0, %v892
      %v894 = vpop.f32.mrb[0].mxu0
      %895 = vmatprep.mubr.bf16.mxu0 %v808
      %896 = vmatmul.mubr.bf16.gmra.mrb[0].mxu0 %v807
      %v897 = vpop.f32.mrb[0].mxu0
      %v898 = vadd.f32 0.0, %v897
      %v899 = vpop.f32.mrb[0].mxu0
      %v900 = vpop.f32.mrb[0].mxu0
      %v901 = vadd.f32 0.0, %v900
      %v902 = vpop.f32.mrb[0].mxu0
      %903 = vmatprep.mubr.bf16.mxu0 %v810
      %904 = vmatmul.mubr.bf16.gmra.mrb[0].mxu0 %v809
      %v905 = vpop.f32.mrb[0].mxu0
      %v906 = vadd.f32 0.0, %v905
      %v907 = vpop.f32.mrb[0].mxu0
      %v908 = vpop.f32.mrb[0].mxu0
      %v909 = vadd.f32 0.0, %v908
      %v910 = vpop.f32.mrb[0].mxu0
      %911 = vmatprep.mubr.bf16.mxu0 %v812
      %912 = vmatmul.mubr.bf16.gmra.mrb[0].mxu0 %v811
      %v913 = vpop.f32.mrb[0].mxu0
      %v914 = vadd.f32 0.0, %v913
      %v915 = vpop.f32.mrb[0].mxu0
      %v916 = vpop.f32.mrb[0].mxu0
      %v917 = vadd.f32 0.0, %v916
      %v918 = vpop.f32.mrb[0].mxu0
      %919 = vmatprep.mubr.bf16.mxu0 %v814
      %920 = vmatmul.mubr.bf16.gmra.mrb[0].mxu0 %v813
      %v921 = vpop.f32.mrb[0].mxu0
      %v922 = vadd.f32 0.0, %v921
      %v923 = vpop.f32.mrb[0].mxu0
      %v924 = vpop.f32.mrb[0].mxu0
      %v925 = vadd.f32 0.0, %v924
      %v926 = vpop.f32.mrb[0].mxu0
      %927 = vdwg.mxu0
      %v928 = vpack.c.bf16 %v869, %v866
      %v929 = vpack.c.bf16 %v877, %v874
      %v930 = vpack.c.bf16 %v885, %v882
      %v931 = vpack.c.bf16 %v893, %v890
      %v932 = vld [vmem:[%s4] sm:$0xf]
      %v933 = vld [vmem:[%s4 + $0x4] sm:$0xf]
      %v934 = vld [vmem:[%s4 + $0x8] sm:$0xf]
      %v935 = vld [vmem:[%s4 + $0xc] sm:$0xf]
      %v936 = vpack.c.bf16 %v901, %v898
      %v937 = vpack.c.bf16 %v909, %v906
      %v938 = vpack.c.bf16 %v917, %v914
      %v939 = vpack.c.bf16 %v925, %v922
      %v940 = vld [vmem:[%s5] sm:$0xf]
      %v941 = vld [vmem:[%s5 + $0x4] sm:$0xf]
      %v942 = vld [vmem:[%s5 + $0x8] sm:$0xf]
      %v943 = vld [vmem:[%s5 + $0xc] sm:$0xf]
      %v948 = vunpack.c.l.b16 %v940
      %v949 = vunpack.c.l.b16 %v941
      %v950 = vunpack.c.l.b16 %v942
      %v951 = vunpack.c.l.b16 %v943
      %v952 = vpack.c.b16 %v949, %v948
      %v953 = vpack.c.b16 %v951, %v950
      %vm956 = vcmask 261120
      %v958 = vsel %vm956, %v936, 0
      %v961 = vsel %vm956, %v937, 0
      %v964 = vsel %vm956, %v938, 0
      %v967 = vsel %vm956, %v939, 0
      %969 = vmatprep.subr.bf16.mxu0 0
      %970 = vmatpush1.bf16.msra.mxu0 %v952
      %971 = vmatprep.subr.bf16.mxu0 0
      %972 = vmatpush1.bf16.msra.mxu0 %v953
      %973 = vmatprep.subr.bf16.mxu0 0
      %974 = vmatpush1.bf16.msra.mxu0 0
      %975 = vmatprep.subr.bf16.mxu0 0
      %976 = vmatpush1.bf16.msra.mxu0 0
      %977 = vmatprep.subr.bf16.mxu0 0
      %978 = vmatpush1.bf16.msra.mxu0 0
      %979 = vmatprep.subr.bf16.mxu0 0
      %980 = vmatpush1.bf16.msra.mxu0 0
      %981 = vmatprep.subr.bf16.mxu0 0
      %982 = vmatpush1.bf16.msra.mxu0 0
      %983 = vmatprep.subr.bf16.mxu0 0
      %984 = vmatpush1.bf16.msra.mxu0 0
      %985 = vmatprep.subr.bf16.mxu0 0
      %986 = vmatpush1.bf16.msra.mxu0 0
      %987 = vmatprep.subr.bf16.mxu0 0
      %988 = vmatpush1.bf16.msra.mxu0 0
      %989 = vmatprep.subr.bf16.mxu0 0
      %990 = vmatpush1.bf16.msra.mxu0 0
      %991 = vmatprep.subr.bf16.mxu0 0
      %992 = vmatpush1.bf16.msra.mxu0 0
      %993 = vmatprep.subr.bf16.mxu0 0
      %994 = vmatpush1.bf16.msra.mxu0 0
      %995 = vmatprep.subr.bf16.mxu0 0
      %996 = vmatpush1.bf16.msra.mxu0 0
      %997 = vmatprep.subr.bf16.mxu0 0
      %998 = vmatpush1.bf16.msra.mxu0 0
      %999 = vmatprep.subr.bf16.mxu0 0
      %1000 = vmatpush1.bf16.msra.mxu0 0
      %1001 = vmatprep.mubr.bf16.mxu0 0
      %1002 = vmatmul.mubr.bf16.gmra.mrb[0].mxu0 %v958
      %v1003 = vpop.f32.mrb[0].mxu0
      %v1004 = vadd.f32 0.0, %v1003
      %v1005 = vpop.f32.mrb[0].mxu0
      %v1006 = vpop.f32.mrb[0].mxu0
      %v1007 = vadd.f32 0.0, %v1006
      %v1008 = vpop.f32.mrb[0].mxu0
      %1009 = vmatprep.mubr.bf16.mxu0 0
      %1010 = vmatmul.mubr.bf16.gmra.mrb[0].mxu0 %v961
      %v1011 = vpop.f32.mrb[0].mxu0
      %v1012 = vadd.f32 0.0, %v1011
      %v1013 = vpop.f32.mrb[0].mxu0
      %v1014 = vpop.f32.mrb[0].mxu0
      %v1015 = vadd.f32 0.0, %v1014
      %v1016 = vpop.f32.mrb[0].mxu0
      %1017 = vmatprep.mubr.bf16.mxu0 0
      %1018 = vmatmul.mubr.bf16.gmra.mrb[0].mxu0 %v964
      %v1019 = vpop.f32.mrb[0].mxu0
      %v1020 = vadd.f32 0.0, %v1019
      %v1021 = vpop.f32.mrb[0].mxu0
      %v1022 = vpop.f32.mrb[0].mxu0
      %v1023 = vadd.f32 0.0, %v1022
      %v1024 = vpop.f32.mrb[0].mxu0
      %1025 = vmatprep.mubr.bf16.mxu0 0
      %1026 = vmatmul.mubr.bf16.gmra.mrb[0].mxu0 %v967
      %v1027 = vpop.f32.mrb[0].mxu0
      %v1028 = vadd.f32 0.0, %v1027
      %v1029 = vpop.f32.mrb[0].mxu0
      %v1030 = vpop.f32.mrb[0].mxu0
      %v1031 = vadd.f32 0.0, %v1030
      %v1032 = vpop.f32.mrb[0].mxu0
      %1033 = vdwg.mxu0
      %v1038 = vunpack.c.l.b16 %v932
      %v1039 = vunpack.c.l.b16 %v933
      %v1040 = vunpack.c.l.b16 %v934
      %v1041 = vunpack.c.l.b16 %v935
      %v1042 = vpack.c.b16 %v1039, %v1038
      %v1043 = vpack.c.b16 %v1041, %v1040
      %v1047 = vsel %vm956, %v928, 0
      %v1050 = vsel %vm956, %v929, 0
      %v1053 = vsel %vm956, %v930, 0
      %v1056 = vsel %vm956, %v931, 0
      %1058 = vmatprep.subr.bf16.mxu0 0
      %1059 = vmatpush1.bf16.msra.mxu0 %v1042
      %1060 = vmatprep.subr.bf16.mxu0 0
      %1061 = vmatpush1.bf16.msra.mxu0 %v1043
      %1062 = vmatprep.subr.bf16.mxu0 0
      %1063 = vmatpush1.bf16.msra.mxu0 0
      %1064 = vmatprep.subr.bf16.mxu0 0
      %1065 = vmatpush1.bf16.msra.mxu0 0
      %1066 = vmatprep.subr.bf16.mxu0 0
      %1067 = vmatpush1.bf16.msra.mxu0 0
      %1068 = vmatprep.subr.bf16.mxu0 0
      %1069 = vmatpush1.bf16.msra.mxu0 0
      %1070 = vmatprep.subr.bf16.mxu0 0
      %1071 = vmatpush1.bf16.msra.mxu0 0
      %1072 = vmatprep.subr.bf16.mxu0 0
      %1073 = vmatpush1.bf16.msra.mxu0 0
      %1074 = vmatprep.subr.bf16.mxu0 0
      %1075 = vmatpush1.bf16.msra.mxu0 0
      %1076 = vmatprep.subr.bf16.mxu0 0
      %1077 = vmatpush1.bf16.msra.mxu0 0
      %1078 = vmatprep.subr.bf16.mxu0 0
      %1079 = vmatpush1.bf16.msra.mxu0 0
      %1080 = vmatprep.subr.bf16.mxu0 0
      %1081 = vmatpush1.bf16.msra.mxu0 0
      %1082 = vmatprep.subr.bf16.mxu0 0
      %1083 = vmatpush1.bf16.msra.mxu0 0
      %1084 = vmatprep.subr.bf16.mxu0 0
      %1085 = vmatpush1.bf16.msra.mxu0 0
      %1086 = vmatprep.subr.bf16.mxu0 0
      %1087 = vmatpush1.bf16.msra.mxu0 0
      %1088 = vmatprep.subr.bf16.mxu0 0
      %1089 = vmatpush1.bf16.msra.mxu0 0
      %1090 = vmatprep.mubr.bf16.mxu0 0
      %1091 = vmatmul.mubr.bf16.gmra.mrb[0].mxu0 %v1047
      %v1092 = vpop.f32.mrb[0].mxu0
      %v1093 = vadd.f32 %v1004, %v1092
      %v1094 = vpop.f32.mrb[0].mxu0
      %v1095 = vpop.f32.mrb[0].mxu0
      %v1096 = vadd.f32 %v1007, %v1095
      %v1097 = vpop.f32.mrb[0].mxu0
      %1098 = vmatprep.mubr.bf16.mxu0 0
      %1099 = vmatmul.mubr.bf16.gmra.mrb[0].mxu0 %v1050
      %v1100 = vpop.f32.mrb[0].mxu0
      %v1101 = vadd.f32 %v1012, %v1100
      %v1102 = vpop.f32.mrb[0].mxu0
      %v1103 = vpop.f32.mrb[0].mxu0
      %v1104 = vadd.f32 %v1015, %v1103
      %v1105 = vpop.f32.mrb[0].mxu0
      %1106 = vmatprep.mubr.bf16.mxu0 0
      %1107 = vmatmul.mubr.bf16.gmra.mrb[0].mxu0 %v1053
      %v1108 = vpop.f32.mrb[0].mxu0
      %v1109 = vadd.f32 %v1020, %v1108
      %v1110 = vpop.f32.mrb[0].mxu0
      %v1111 = vpop.f32.mrb[0].mxu0
      %v1112 = vadd.f32 %v1023, %v1111
      %v1113 = vpop.f32.mrb[0].mxu0
      %1114 = vmatprep.mubr.bf16.mxu0 0
      %1115 = vmatmul.mubr.bf16.gmra.mrb[0].mxu0 %v1056
      %v1116 = vpop.f32.mrb[0].mxu0
      %v1117 = vadd.f32 %v1028, %v1116
      %v1118 = vpop.f32.mrb[0].mxu0
      %v1119 = vpop.f32.mrb[0].mxu0
      %v1120 = vadd.f32 %v1031, %v1119
      %v1121 = vpop.f32.mrb[0].mxu0
      %1122 = vdwg.mxu0
      %v1123 = vld [vmem:[%s6] sm:$0x1]
      %v1125 = vlaneseq
      %v1126 = vshrl.u32 %v1125, 7
      %v1127 = vsub.s32 0, %v1126
      %v1128 = vrot.slane %v1123, %v1127
      %v1130 = vadd.f32 %v1093, %v1128
      %v1131 = vadd.f32 %v1096, %v1128
      %v1132 = vadd.f32 %v1101, %v1128
      %v1133 = vadd.f32 %v1104, %v1128
      %v1134 = vadd.f32 %v1109, %v1128
      %v1135 = vadd.f32 %v1112, %v1128
      %v1136 = vadd.f32 %v1117, %v1128
      %v1137 = vadd.f32 %v1120, %v1128
      %v1138 = vmax.f32 %v1130, 0.0
      %v1139 = vmax.f32 %v1131, 0.0
      %v1140 = vmax.f32 %v1132, 0.0
      %v1141 = vmax.f32 %v1133, 0.0
      %v1142 = vmax.f32 %v1134, 0.0
      %v1143 = vmax.f32 %v1135, 0.0
      %v1144 = vmax.f32 %v1136, 0.0
      %v1145 = vmax.f32 %v1137, 0.0
      %v1146 = vpack.c.bf16 %v1139, %v1138
      %v1147 = vpack.c.bf16 %v1141, %v1140
      %v1148 = vpack.c.bf16 %v1143, %v1142
      %v1149 = vpack.c.bf16 %v1145, %v1144
      %v1150 = vld [vmem:[%s7] sm:$0xf]
      %v1151 = vld [vmem:[%s7 + $0x4] sm:$0xf]
      %v1152 = vld [vmem:[%s7 + $0x8] sm:$0xf]
      %v1153 = vld [vmem:[%s7 + $0xc] sm:$0xf]
      %v1154 = vld [vmem:[%s7 + $0x10] sm:$0xf]
      %v1155 = vld [vmem:[%s7 + $0x14] sm:$0xf]
      %v1156 = vld [vmem:[%s7 + $0x18] sm:$0xf]
      %v1157 = vld [vmem:[%s7 + $0x1c] sm:$0xf]
      %v1158 = vld [vmem:[%s8] sm:$0x1]
      %v1160 = vlaneseq
      %v1161 = vshrl.u32 %v1160, 7
      %v1162 = vsub.s32 0, %v1161
      %v1163 = vrot.slane %v1158, %v1162
      %v1173 = vunpack.c.l.b16 %v1150
      %v1174 = vunpack.c.l.b16 %v1151
      %v1175 = vunpack.c.l.b16 %v1152
      %v1176 = vunpack.c.l.b16 %v1153
      %v1177 = vunpack.c.l.b16 %v1154
      %v1178 = vunpack.c.l.b16 %v1155
      %v1179 = vunpack.c.l.b16 %v1156
      %v1180 = vunpack.c.l.b16 %v1157
      %v1181 = vpack.c.b16 %v1174, %v1173
      %v1182 = vpack.c.b16 %v1176, %v1175
      %v1183 = vpack.c.b16 %v1178, %v1177
      %v1184 = vpack.c.b16 %v1180, %v1179
      %vm1189 = vcmask 523264
      %v1191 = vsel %vm1189, %v1146, 0
      %v1194 = vsel %vm1189, %v1147, 0
      %v1197 = vsel %vm1189, %v1148, 0
      %v1200 = vsel %vm1189, %v1149, 0
      %1202 = vmatprep.subr.bf16.mxu0 0
      %1203 = vmatpush1.bf16.msra.mxu0 %v1181
      %1204 = vmatprep.subr.bf16.mxu0 0
      %1205 = vmatpush1.bf16.msra.mxu0 %v1182
      %1206 = vmatprep.subr.bf16.mxu0 0
      %1207 = vmatpush1.bf16.msra.mxu0 %v1183
      %1208 = vmatprep.subr.bf16.mxu0 0
      %1209 = vmatpush1.bf16.msra.mxu0 %v1184
      %1210 = vmatprep.subr.bf16.mxu0 0
      %1211 = vmatpush1.bf16.msra.mxu0 0
      %1212 = vmatprep.subr.bf16.mxu0 0
      %1213 = vmatpush1.bf16.msra.mxu0 0
      %1214 = vmatprep.subr.bf16.mxu0 0
      %1215 = vmatpush1.bf16.msra.mxu0 0
      %1216 = vmatprep.subr.bf16.mxu0 0
      %1217 = vmatpush1.bf16.msra.mxu0 0
      %1218 = vmatprep.subr.bf16.mxu0 0
      %1219 = vmatpush1.bf16.msra.mxu0 0
      %1220 = vmatprep.subr.bf16.mxu0 0
      %1221 = vmatpush1.bf16.msra.mxu0 0
      %1222 = vmatprep.subr.bf16.mxu0 0
      %1223 = vmatpush1.bf16.msra.mxu0 0
      %1224 = vmatprep.subr.bf16.mxu0 0
      %1225 = vmatpush1.bf16.msra.mxu0 0
      %1226 = vmatprep.subr.bf16.mxu0 0
      %1227 = vmatpush1.bf16.msra.mxu0 0
      %1228 = vmatprep.subr.bf16.mxu0 0
      %1229 = vmatpush1.bf16.msra.mxu0 0
      %1230 = vmatprep.subr.bf16.mxu0 0
      %1231 = vmatpush1.bf16.msra.mxu0 0
      %1232 = vmatprep.subr.bf16.mxu0 0
      %1233 = vmatpush1.bf16.msra.mxu0 0
      %1234 = vmatprep.mubr.bf16.mxu0 0
      %1235 = vmatmul.mubr.bf16.gmra.mrb[0].mxu0 %v1191
      %v1236 = vpop.f32.mrb[0].mxu0
      %v1237 = vadd.f32 %v1163, %v1236
      %v1238 = vpop.f32.mrb[0].mxu0
      %v1239 = vpop.f32.mrb[0].mxu0
      %v1240 = vadd.f32 %v1163, %v1239
      %v1241 = vpop.f32.mrb[0].mxu0
      %1242 = vmatprep.mubr.bf16.mxu0 0
      %1243 = vmatmul.mubr.bf16.gmra.mrb[0].mxu0 %v1194
      %v1244 = vpop.f32.mrb[0].mxu0
      %v1245 = vadd.f32 %v1163, %v1244
      %v1246 = vpop.f32.mrb[0].mxu0
      %v1247 = vpop.f32.mrb[0].mxu0
      %v1248 = vadd.f32 %v1163, %v1247
      %v1249 = vpop.f32.mrb[0].mxu0
      %1250 = vmatprep.mubr.bf16.mxu0 0
      %1251 = vmatmul.mubr.bf16.gmra.mrb[0].mxu0 %v1197
      %v1252 = vpop.f32.mrb[0].mxu0
      %v1253 = vadd.f32 %v1163, %v1252
      %v1254 = vpop.f32.mrb[0].mxu0
      %v1255 = vpop.f32.mrb[0].mxu0
      %v1256 = vadd.f32 %v1163, %v1255
      %v1257 = vpop.f32.mrb[0].mxu0
      %1258 = vmatprep.mubr.bf16.mxu0 0
      %1259 = vmatmul.mubr.bf16.gmra.mrb[0].mxu0 %v1200
      %v1260 = vpop.f32.mrb[0].mxu0
      %v1261 = vadd.f32 %v1163, %v1260
      %v1262 = vpop.f32.mrb[0].mxu0
      %v1263 = vpop.f32.mrb[0].mxu0
      %v1264 = vadd.f32 %v1163, %v1263
      %v1265 = vpop.f32.mrb[0].mxu0
      %1266 = vdwg.mxu0
      %1267 = vst [vmem:[%s332] sm:$0xff] %v1237
      %1268 = vst [vmem:[%s332 + $0x8] sm:$0xff] %v1240
      %1269 = vst [vmem:[%s332 + $0x10] sm:$0xff] %v1245
      %1270 = vst [vmem:[%s332 + $0x18] sm:$0xff] %v1248
      %1271 = vst [vmem:[%s332 + $0x20] sm:$0xff] %v1253
      %1272 = vst [vmem:[%s332 + $0x28] sm:$0xff] %v1256
      %1273 = vst [vmem:[%s332 + $0x30] sm:$0xff] %v1261
      %1274 = vst [vmem:[%s332 + $0x38] sm:$0xff] %v1264
      %p1275 = scmp.lt.s32.totalorder %s20, 1
      %s1276 = scalar_select %p1275, %s20, 1
      %s1277 = smul.addr %s1276, 8
      %s1278 = smul.addr %s1277, 8
      %s1279 = scalar_lea.vmem %s9, %s1278
      // Predicated region
      $region57: #{model_forward.1} parent=55 // pred_check
        %p1280 = pneg %p232
      $region58: #{model_forward.1} parent=55 // pred_check_branch
        %1282 = sbr.rel (%p1280) target = $region60
      $region59: #{model_forward.1} parent=55 // pred_region
        _
      $region60: #{model_forward.1} parent=55 // pred_fallthru
        _
    $region56: #{model_forward.1} parent=5 // pred_fallthru
      _
    %p1283 = scmp.le.s32.totalorder 2, %s15
    // Predicated region
    $region61: #{model_forward.1} parent=5 // pred_check
      %p1284 = pneg %p1283
    $region62: #{model_forward.1} parent=5 // pred_check_branch
      %1286 = sbr.rel (%p1284) target = $region64
    $region63: #{model_forward.1} parent=5 // pred_region
      %s1287 = ssub.s32 %s15, 2
      // Predicated region
      $region65: #{model_forward.1} parent=63 // pred_check
        %p1288 = pneg %p238
      $region66: #{model_forward.1} parent=63 // pred_check_branch
        %1290 = sbr.rel (%p1288) target = $region68
      $region67: #{model_forward.1} parent=63 // pred_region
        %p1291 = scmp.lt.s32.totalorder %s21, 1
        %s1292 = scalar_select %p1291, %s21, 1
        %s1293 = smul.addr %s1292, 8
        %s1294 = smul.addr %s1293, 8
        %s1295 = scalar_lea.vmem %s9, %s1294
      $region68: #{model_forward.1} parent=63 // pred_fallthru
        _
    $region64: #{model_forward.1} parent=5 // pred_fallthru
      _
  $region6: #{model_forward.1} parent=0 // loop_footer
    %s19 = sadd.s32 1, %s15
  $region7: #{model_forward.1} parent=0 // loop_footer_branch
    %14 = sbr.rel target = $region3
  $region8: #{model_forward.1} parent=0 // loop_exit
    _

</llo_original>
